<compile_context>
chip_gen: v7x
topology: tpu7x:2x2x1
jax: 0.10.0
libtpu: 0.0.40
codegen_flags: <defaults>
</compile_context>

<pallas_src>
import jax
import jax.numpy as jnp
from jax.experimental import pallas as pl
from jax.experimental.pallas import tpu as pltpu

IN_FEATURES = 8
OUT_FEATURES = 4
PACK = 32                          # original rows packed per lane-dense row
PACKED_IN = PACK * IN_FEATURES     # 256
PACKED_OUT = PACK * OUT_FEATURES   # 128
HALF_OUT = PACK * 2                # 64 (concentration lanes / rate lanes)


def _round_up(x: int, m: int) -> int:
    return ((x + m - 1) // m) * m


def _cdiv(a: int, b: int) -> int:
    return -(-a // b)


def _gamma_extractor_kernel(x_ref, w_ref, b_ref, conc_ref, rate_ref):
    # x_ref: (TB, 256) input dtype; w_ref: (256, 128) bf16 block-diagonal
    # (columns reordered: conc -> lanes 0..63, rate -> lanes 64..127);
    # b_ref: (1, 128) f32.
    x = x_ref[...]
    w = w_ref[...]
    # Single-pass bf16 MXU matmul, f32 accumulation. No f32 upcasts here.
    y = jnp.dot(x.astype(w.dtype), w, preferred_element_type=jnp.float32)
    y = y + b_ref[...]
    # Numerically stable softplus: max(y, 0) + log1p(exp(-|y|)).
    # TODO(synk): if o_ref dtype is bf16 and the bundle shows the EUP as the
    # bottleneck on v7x, compute this epilogue in bf16.
    sp = jnp.maximum(y, 0.0) + jnp.log1p(jnp.exp(-jnp.abs(y)))
    conc_ref[...] = sp[:, :HALF_OUT].astype(conc_ref.dtype)
    rate_ref[...] = sp[:, HALF_OUT:].astype(rate_ref.dtype)


def gamma_extractor_pallas(latent, weight, bias, *, block_rows: int = 4096,
                           mxu_dtype=jnp.bfloat16):
    """latent: (..., 8). weight: (8, 4) (= PyTorch weight.T). bias: (4,).

    block_rows = packed-row tile size (1 packed row = 32 batch rows). 4096
    (~12 MiB double-buffered) is safe on v5e/v6e/v7x; 8192 is fine on v6e.
    Returns the same dict structure as the PyTorch module.
    """
    orig_shape = latent.shape
    assert orig_shape[-1] == IN_FEATURES
    x2d = latent.reshape(-1, IN_FEATURES)                 # (B, 8)
    B = x2d.shape[0]
    in_dtype = x2d.dtype

    # ---- packed-row geometry: pad only to a multiple of 8 packed rows ----
    rp = _cdiv(B, PACK)
    rp_padded = _round_up(max(rp, 1), 8)
    b_padded = rp_padded * PACK

    # Tile: as large as requested, but (a) never larger than the array and
    # (b) capped at ~half the rows (rounded to 8) so the grid has >= 2 steps
    # for v7x megacore sharding when there is enough work.
    tile = min(block_rows, rp_padded)
    if rp_padded >= 16:
        tile = min(tile, _round_up(_cdiv(rp_padded, 2), 8))
    tile = _round_up(tile, 8)
    grid = (_cdiv(rp_padded, tile),)                      # partial last block OK

    # ---- wrapper-side packing (pad only when B is ragged) ----
    if b_padded != B:
        x2d = jnp.pad(x2d, ((0, b_padded - B), (0, 0)))
    x_packed = x2d.reshape(rp_padded, PACKED_IN)          # (Rp, 256) free reshape

    # Block-diagonal weight, columns reordered: concentration (features 0,1)
    # -> lanes 2p+o (0..63); rate (features 2,3) -> lanes 64+2p+o.
    eye = jnp.eye(PACK, dtype=jnp.float32)
    w32 = weight.astype(jnp.float32)
    w_conc = jnp.einsum("pq,io->piqo", eye, w32[:, :2]).reshape(PACKED_IN, HALF_OUT)
    w_rate = jnp.einsum("pq,io->piqo", eye, w32[:, 2:]).reshape(PACKED_IN, HALF_OUT)
    w_packed = jnp.concatenate([w_conc, w_rate], axis=1).astype(mxu_dtype)  # (256,128)
    b32 = bias.astype(jnp.float32)
    b_packed = jnp.concatenate(
        [jnp.tile(b32[:2], PACK), jnp.tile(b32[2:], PACK)]).reshape(1, PACKED_OUT)

    # ---- VMEM budget for the chosen tile (double-buffered in/out) ----
    in_item = jnp.dtype(in_dtype).itemsize
    w_item = jnp.dtype(mxu_dtype).itemsize
    block_bytes = tile * PACKED_IN * in_item + 2 * tile * HALF_OUT * in_item
    vmem_need = 2 * block_bytes + PACKED_IN * PACKED_OUT * w_item + PACKED_OUT * 4
    vmem_limit = int(max(32 << 20, vmem_need + (8 << 20)))  # keep block_rows<=8192 on v7x

    conc_p, rate_p = pl.pallas_call(
        _gamma_extractor_kernel,
        out_shape=(
            jax.ShapeDtypeStruct((rp_padded, HALF_OUT), in_dtype),
            jax.ShapeDtypeStruct((rp_padded, HALF_OUT), in_dtype),
        ),
        grid=grid,
        in_specs=[
            pl.BlockSpec((tile, PACKED_IN), lambda i: (i, 0)),
            pl.BlockSpec((PACKED_IN, PACKED_OUT), lambda i: (0, 0)),
            pl.BlockSpec((1, PACKED_OUT), lambda i: (0, 0)),
        ],
        out_specs=[
            pl.BlockSpec((tile, HALF_OUT), lambda i: (i, 0)),
            pl.BlockSpec((tile, HALF_OUT), lambda i: (i, 0)),
        ],
        compiler_params=pltpu.CompilerParams(
            dimension_semantics=("parallel",),
            vmem_limit_bytes=vmem_limit,
        ),
        cost_estimate=pl.CostEstimate(
            flops=2 * rp_padded * PACKED_IN * PACKED_OUT,
            transcendentals=2 * rp_padded * PACKED_OUT,
            bytes_accessed=(
                rp_padded * (PACKED_IN * in_item + 2 * HALF_OUT * in_item)
                + PACKED_IN * PACKED_OUT * w_item + PACKED_OUT * 4
            ),
        ),
    )(x_packed, w_packed, b_packed)

    def _unpack(o):
        o = o.reshape(b_padded, 2)            # free (row-major, contiguous)
        if b_padded != B:
            o = o[:B]
        return o.reshape(orig_shape[:-1] + (2,))

    return {
        ("params", "healing", "concentration"): _unpack(conc_p),
        ("params", "healing", "rate"): _unpack(rate_p),
    }


# ----------------------------- verification -----------------------------

def _reference(latent, weight, bias, dot_dtype=None):
    x, w = latent, weight
    if dot_dtype is not None:
        x = x.astype(dot_dtype)
        w = w.astype(dot_dtype)
    y = jnp.dot(x, w, preferred_element_type=jnp.float32) + bias.astype(jnp.float32)
    sp = jax.nn.softplus(y).astype(latent.dtype)
    return {
        ("params", "healing", "concentration"): sp[..., :2],
        ("params", "healing", "rate"): sp[..., 2:],
    }


def _check(latent, weight, bias):
    out = gamma_extractor_pallas(latent, weight, bias)
    out = jax.tree_util.tree_map(jax.block_until_ready, out)
    # Tight check against a bf16-MXU-matched reference (kernel mechanics).
    ref_bf16 = _reference(latent, weight, bias, dot_dtype=jnp.bfloat16)
    # Loose check against the pure-f32 module semantics (the single-pass bf16
    # MXU is a deliberate TPU precision tradeoff, ~1e-3 level on these scales).
    ref_f32 = _reference(latent, weight, bias)
    for k in ref_f32:
        assert out[k].shape == ref_f32[k].shape, (k, out[k].shape, ref_f32[k].shape)
        assert jnp.allclose(out[k], ref_bf16[k], atol=1e-4, rtol=1e-4), k
        assert jnp.allclose(out[k], ref_f32[k], atol=2e-2, rtol=2e-2), k


if __name__ == "__main__":
    key = jax.random.PRNGKey(0)
    k_x, k_w, k_b, k_x2, k_x3 = jax.random.split(key, 5)

    # Deterministic params (mimics nn.Linear's uniform(-1/sqrt(8), 1/sqrt(8))).
    bound = 1.0 / jnp.sqrt(float(IN_FEATURES))
    weight = jax.random.uniform(
        k_w, (IN_FEATURES, OUT_FEATURES), minval=-bound, maxval=bound,
        dtype=jnp.float32)
    bias = jax.random.uniform(
        k_b, (OUT_FEATURES,), minval=-bound, maxval=bound, dtype=jnp.float32)

    # Small shape matching the module spec.
    _check(jax.random.normal(k_x, (2, IN_FEATURES), dtype=jnp.float32), weight, bias)
    # Ragged batch (padding path, B not a multiple of 32).
    _check(jax.random.normal(k_x2, (70, IN_FEATURES), dtype=jnp.float32), weight, bias)
    # Larger batch exercising grid >= 2 and a partial last block.
    _check(jax.random.normal(k_x3, (700, IN_FEATURES), dtype=jnp.float32), weight, bias)

    print("KERNEL_OK")
</pallas_src>

<mosaic_0001>
module attributes {stable_mosaic.version = 11 : i64} {
  func.func @_gamma_extractor_kernel(%arg0: i32, %arg1: memref<8x256xf32, #tpu.memory_space<vmem>>, %arg2: memref<256x128xbf16, #tpu.memory_space<vmem>>, %arg3: memref<1x128xf32, #tpu.memory_space<vmem>>, %arg4: memref<8x64xf32, #tpu.memory_space<vmem>>, %arg5: memref<8x64xf32, #tpu.memory_space<vmem>>) attributes {dimension_semantics = [#tpu.dimension_semantics<parallel>], iteration_bounds = array<i64: 1>, scalar_prefetch = 0 : i64, scratch_operands = 0 : i64, tpu.core_type = #tpu.core_type<tc>, window_params = [{transform_indices = @transform_0, window_bounds = array<i64: 8, 256>}, {pipeline_mode = #tpu.pipeline_mode<synchronous>, transform_indices = @transform_1, window_bounds = array<i64: 256, 128>}, {pipeline_mode = #tpu.pipeline_mode<synchronous>, transform_indices = @transform_2, window_bounds = array<i64: 1, 128>}, {transform_indices = @transform_3, window_bounds = array<i64: 8, 64>}, {transform_indices = @transform_4, window_bounds = array<i64: 8, 64>}]} {
    %c0 = arith.constant 0 : index
    %c0_0 = arith.constant 0 : index
    %0 = vector.load %arg1[%c0, %c0_0] : memref<8x256xf32, #tpu.memory_space<vmem>>, vector<8x256xf32>
    %c0_1 = arith.constant 0 : index
    %c0_2 = arith.constant 0 : index
    %1 = vector.load %arg2[%c0_1, %c0_2] : memref<256x128xbf16, #tpu.memory_space<vmem>>, vector<256x128xbf16>
    %2 = arith.truncf %0 : vector<8x256xf32> to vector<8x256xbf16>
    %cst = arith.constant dense<0.000000e+00> : vector<8x128xf32>
    %3 = tpu.matmul %2, %1, %cst {dimension_numbers = #tpu.dot_dimension_numbers<[1], [0], [0], [1], [0, 0, 1, 1], [], []>} : vector<8x256xbf16>, vector<256x128xbf16>, vector<8x128xf32> -> vector<8x128xf32>
    %c0_3 = arith.constant 0 : index
    %c0_4 = arith.constant 0 : index
    %4 = vector.load %arg3[%c0_3, %c0_4] : memref<1x128xf32, #tpu.memory_space<vmem>>, vector<1x128xf32>
    %5 = vector.broadcast %4 : vector<1x128xf32> to vector<8x128xf32>
    %6 = arith.addf %3, %5 : vector<8x128xf32>
    %cst_5 = arith.constant 0.000000e+00 : f32
    %7 = vector.broadcast %cst_5 : f32 to vector<8x128xf32>
    %8 = arith.maximumf %6, %7 : vector<8x128xf32>
    %9 = math.absf %6 : vector<8x128xf32>
    %cst_6 = arith.constant 0.000000e+00 : f32
    %10 = vector.broadcast %cst_6 : f32 to vector<8x128xf32>
    %11 = arith.subf %10, %9 : vector<8x128xf32>
    %12 = math.exp %11 : vector<8x128xf32>
    %13 = math.log1p %12 : vector<8x128xf32>
    %14 = arith.addf %8, %13 : vector<8x128xf32>
    %15 = vector.extract_strided_slice %14 {offsets = [0, 0], sizes = [8, 64], strides = [1, 1]} : vector<8x128xf32> to vector<8x64xf32>
    %c0_7 = arith.constant 0 : index
    %c0_8 = arith.constant 0 : index
    %16 = vector.load %arg4[%c0_7, %c0_8] : memref<8x64xf32, #tpu.memory_space<vmem>>, vector<8x64xf32>
    tpu.vector_store %arg4[%c0_7, %c0_8], %15 {strides = array<i32>} : memref<8x64xf32, #tpu.memory_space<vmem>>, vector<8x64xf32>,
    %17 = vector.extract_strided_slice %14 {offsets = [0, 64], sizes = [8, 64], strides = [1, 1]} : vector<8x128xf32> to vector<8x64xf32>
    %c0_9 = arith.constant 0 : index
    %c0_10 = arith.constant 0 : index
    %18 = vector.load %arg5[%c0_9, %c0_10] : memref<8x64xf32, #tpu.memory_space<vmem>>, vector<8x64xf32>
    tpu.vector_store %arg5[%c0_9, %c0_10], %17 {strides = array<i32>} : memref<8x64xf32, #tpu.memory_space<vmem>>, vector<8x64xf32>,
    return
  }
  func.func @transform_0(%arg0: i32) -> (i32, i32) {
    %c0_i32 = arith.constant 0 : i32
    %c0_i32_0 = arith.constant 0 : i32
    return %arg0, %c0_i32 : i32, i32
  }
  func.func @transform_1(%arg0: i32) -> (i32, i32) {
    %c0_i32 = arith.constant 0 : i32
    %c0_i32_0 = arith.constant 0 : i32
    %c0_i32_1 = arith.constant 0 : i32
    return %c0_i32, %c0_i32_0 : i32, i32
  }
  func.func @transform_2(%arg0: i32) -> (i32, i32) {
    %c0_i32 = arith.constant 0 : i32
    %c0_i32_0 = arith.constant 0 : i32
    %c0_i32_1 = arith.constant 0 : i32
    return %c0_i32, %c0_i32_0 : i32, i32
  }
  func.func @transform_3(%arg0: i32) -> (i32, i32) {
    %c0_i32 = arith.constant 0 : i32
    %c0_i32_0 = arith.constant 0 : i32
    return %arg0, %c0_i32 : i32, i32
  }
  func.func @transform_4(%arg0: i32) -> (i32, i32) {
    %c0_i32 = arith.constant 0 : i32
    %c0_i32_0 = arith.constant 0 : i32
    return %arg0, %c0_i32 : i32, i32
  }
}

</mosaic_0001>

<llo_original>
// kernel: tpu_custom_call.1
$region0: #{tpu_custom_call.1}
  #allocation0 [shape = 'u32[]', space=smem, size = 0x4, offset = 0x4, fixed_abs, tag = 'smem constant byte address 0x4 - core index']
  #allocation1 [shape = 'u32[144,128]{1,0:T(1,128)}', space=vmem, size = 0x12000, scoped, tag = 'internal scratch']
  %s0 = inlined_call_operand.hbm [shape: f32[8,256], index: 0, kind: input, shape index: {}]
  %s1 = inlined_call_operand.hbm [shape: bf16[256,128], index: 1, kind: input, shape index: {}]
  %s2 = inlined_call_operand.vmem [shape: f32[1,128], index: 2, kind: input, shape index: {}]
  %s3 = inlined_call_operand.hbm [shape: f32[8,64], index: 3, kind: output, shape index: {0}]
  %s4 = inlined_call_operand.hbm [shape: f32[8,64], index: 4, kind: output, shape index: {1}]
  %5 = xla_tuple %s3, %s4
  %s6 = sld [smem:[#allocation0]]
  $region38: #{tpu_custom_call.1} parent=0
    _
  %s8 = ssub.s32 1, %s6
  %s9 = scalar_select 0, %s8, %s6
  $region1: #{tpu_custom_call.1} parent=0
    #allocation2 [shape = 'u8[8192]{0}', space=vmem, size = 0x2000, scoped, tag = 'input window, operand 0, single buffered']
    #allocation3 [shape = 's32[1]{0}', space=sflag, size = 0x4, scoped, tag = 'scoped memory for tpu_custom_call.1']
    #allocation4 [shape = 's32[1]{0}', space=sflag, size = 0x4, scoped, tag = 'scoped memory for tpu_custom_call.1']
    #allocation5 [shape = 'u8[65536]{0}', space=vmem, size = 0x10000, scoped, tag = 'input window, operand 1, single buffered']
    #allocation6 [shape = 's32[1]{0}', space=sflag, size = 0x4, scoped, tag = 'scoped memory for tpu_custom_call.1']
    #allocation7 [shape = 'u8[4096]{0}', space=vmem, size = 0x1000, scoped, tag = 'output window, operand 0, single buffered']
    #allocation8 [shape = 'u8[4096]{0}', space=vmem, size = 0x1000, scoped, tag = 'output window, operand 1, single buffered']
    #allocation9 [shape = 's32[1]{0}', space=sflag, size = 0x4, scoped, tag = 'scoped memory for tpu_custom_call.1']
    %10 = vsyncpa [#allocation3], 0
    %11 = vsyncpa [#allocation6], 0
    %12 = vsyncpa [#allocation4], 0
    %13 = vsyncpa [#allocation9], 0
    // Predicated region
    $region2: #{tpu_custom_call.1} parent=1 // pred_check
      _
    $region3: #{tpu_custom_call.1} parent=1 // pred_check_branch
      %15 = sbr.rel (0) target = $region5
    $region4: #{tpu_custom_call.1} parent=1 // pred_region
      %s17 = ssub.s32 256, 256
      %18 = vsyncadd [#allocation3], %s17
      %s20 = sshll.u32 [#allocation2], 4
      %s21 = int_to_ptr.vmem [resolvable:$true] %s20
      %23 = dma.hbm_to_vmem [thread:$0]  %s0, 256, %s21, [#allocation3]
    $region5: #{tpu_custom_call.1} parent=1 // pred_fallthru
      _
    // Predicated region
    $region6: #{tpu_custom_call.1} parent=1 // pred_check
      _
    $region7: #{tpu_custom_call.1} parent=1 // pred_check_branch
      %25 = sbr.rel (0) target = $region9
    $region8: #{tpu_custom_call.1} parent=1 // pred_region
      %s27 = ssub.s32 2048, 2048
      %28 = vsyncadd [#allocation6], %s27
      %s29 = sshll.u32 [#allocation5], 4
      %s30 = int_to_ptr.vmem [resolvable:$true] %s29
      %35 = dma.hbm_to_vmem [thread:$0]  %s1, 2048, %s30, [#allocation6], 64, 64, 4
    $region9: #{tpu_custom_call.1} parent=1 // pred_fallthru
      _
    // Predicated region
    $region10: #{tpu_custom_call.1} parent=1 // pred_check
      _
    $region11: #{tpu_custom_call.1} parent=1 // pred_check_branch
      %37 = sbr.rel (0) target = $region13
    $region12: #{tpu_custom_call.1} parent=1 // pred_region
      _
    $region13: #{tpu_custom_call.1} parent=1 // pred_fallthru
      _
    // Predicated region
    $region14: #{tpu_custom_call.1} parent=1 // pred_check
      _
    $region15: #{tpu_custom_call.1} parent=1 // pred_check_branch
      %39 = sbr.rel (0) target = $region17
    $region16: #{tpu_custom_call.1} parent=1 // pred_region
      %40 = dma.done [#allocation3], 256
    $region17: #{tpu_custom_call.1} parent=1 // pred_fallthru
      _
    // Predicated region
    $region18: #{tpu_custom_call.1} parent=1 // pred_check
      _
    $region19: #{tpu_custom_call.1} parent=1 // pred_check_branch
      %42 = sbr.rel (0) target = $region21
    $region20: #{tpu_custom_call.1} parent=1 // pred_region
      %43 = dma.done [#allocation6], 2048
    $region21: #{tpu_custom_call.1} parent=1 // pred_fallthru
      _
    %v45 = vld [vmem:[#allocation2] sm:$0xff]
    %v46 = vld [vmem:[#allocation2 + $0x8] sm:$0xff]
    %v47 = vld [vmem:[#allocation5] sm:$0xf]
    %v48 = vld [vmem:[#allocation5 + $0x4] sm:$0xf]
    %v49 = vld [vmem:[#allocation5 + $0x8] sm:$0xf]
    %v50 = vld [vmem:[#allocation5 + $0xc] sm:$0xf]
    %v51 = vld [vmem:[#allocation5 + $0x10] sm:$0xf]
    %v52 = vld [vmem:[#allocation5 + $0x14] sm:$0xf]
    %v53 = vld [vmem:[#allocation5 + $0x18] sm:$0xf]
    %v54 = vld [vmem:[#allocation5 + $0x1c] sm:$0xf]
    %v55 = vld [vmem:[#allocation5 + $0x20] sm:$0xf]
    %v56 = vld [vmem:[#allocation5 + $0x24] sm:$0xf]
    %v57 = vld [vmem:[#allocation5 + $0x28] sm:$0xf]
    %v58 = vld [vmem:[#allocation5 + $0x2c] sm:$0xf]
    %v59 = vld [vmem:[#allocation5 + $0x30] sm:$0xf]
    %v60 = vld [vmem:[#allocation5 + $0x34] sm:$0xf]
    %v61 = vld [vmem:[#allocation5 + $0x38] sm:$0xf]
    %v62 = vld [vmem:[#allocation5 + $0x3c] sm:$0xf]
    %v63 = vld [vmem:[#allocation5 + $0x40] sm:$0xf]
    %v64 = vld [vmem:[#allocation5 + $0x44] sm:$0xf]
    %v65 = vld [vmem:[#allocation5 + $0x48] sm:$0xf]
    %v66 = vld [vmem:[#allocation5 + $0x4c] sm:$0xf]
    %v67 = vld [vmem:[#allocation5 + $0x50] sm:$0xf]
    %v68 = vld [vmem:[#allocation5 + $0x54] sm:$0xf]
    %v69 = vld [vmem:[#allocation5 + $0x58] sm:$0xf]
    %v70 = vld [vmem:[#allocation5 + $0x5c] sm:$0xf]
    %v71 = vld [vmem:[#allocation5 + $0x60] sm:$0xf]
    %v72 = vld [vmem:[#allocation5 + $0x64] sm:$0xf]
    %v73 = vld [vmem:[#allocation5 + $0x68] sm:$0xf]
    %v74 = vld [vmem:[#allocation5 + $0x6c] sm:$0xf]
    %v75 = vld [vmem:[#allocation5 + $0x70] sm:$0xf]
    %v76 = vld [vmem:[#allocation5 + $0x74] sm:$0xf]
    %v77 = vld [vmem:[#allocation5 + $0x78] sm:$0xf]
    %v78 = vld [vmem:[#allocation5 + $0x7c] sm:$0xf]
    %v79 = vpack.c.bf16 %v45, %v45
    %v80 = vpack.c.bf16 %v46, %v46
    %v81 = vld [vmem:[%s2] sm:$0x1]
    %v83 = vlaneseq
    %v84 = vshrl.u32 %v83, 7
    %v85 = vsub.s32 0, %v84
    %v86 = vrot.slane %v81, %v85
    %v120 = vunpack.c.l.b16 %v47
    %v121 = vunpack.c.l.b16 %v48
    %v122 = vunpack.c.l.b16 %v49
    %v123 = vunpack.c.l.b16 %v50
    %v124 = vunpack.c.l.b16 %v51
    %v125 = vunpack.c.l.b16 %v52
    %v126 = vunpack.c.l.b16 %v53
    %v127 = vunpack.c.l.b16 %v54
    %v128 = vunpack.c.l.b16 %v55
    %v129 = vunpack.c.l.b16 %v56
    %v130 = vunpack.c.l.b16 %v57
    %v131 = vunpack.c.l.b16 %v58
    %v132 = vunpack.c.l.b16 %v59
    %v133 = vunpack.c.l.b16 %v60
    %v134 = vunpack.c.l.b16 %v61
    %v135 = vunpack.c.l.b16 %v62
    %v136 = vunpack.c.l.b16 %v63
    %v137 = vunpack.c.l.b16 %v64
    %v138 = vunpack.c.l.b16 %v65
    %v139 = vunpack.c.l.b16 %v66
    %v140 = vunpack.c.l.b16 %v67
    %v141 = vunpack.c.l.b16 %v68
    %v142 = vunpack.c.l.b16 %v69
    %v143 = vunpack.c.l.b16 %v70
    %v144 = vunpack.c.l.b16 %v71
    %v145 = vunpack.c.l.b16 %v72
    %v146 = vunpack.c.l.b16 %v73
    %v147 = vunpack.c.l.b16 %v74
    %v148 = vunpack.c.l.b16 %v75
    %v149 = vunpack.c.l.b16 %v76
    %v150 = vunpack.c.l.b16 %v77
    %v151 = vunpack.c.l.b16 %v78
    %v152 = vpack.c.b16 %v121, %v120
    %v153 = vpack.c.b16 %v123, %v122
    %v154 = vpack.c.b16 %v125, %v124
    %v155 = vpack.c.b16 %v127, %v126
    %v156 = vpack.c.b16 %v129, %v128
    %v157 = vpack.c.b16 %v131, %v130
    %v158 = vpack.c.b16 %v133, %v132
    %v159 = vpack.c.b16 %v135, %v134
    %v160 = vpack.c.b16 %v137, %v136
    %v161 = vpack.c.b16 %v139, %v138
    %v162 = vpack.c.b16 %v141, %v140
    %v163 = vpack.c.b16 %v143, %v142
    %v164 = vpack.c.b16 %v145, %v144
    %v165 = vpack.c.b16 %v147, %v146
    %v166 = vpack.c.b16 %v149, %v148
    %v167 = vpack.c.b16 %v151, %v150
    %184 = vmatprep.subr.bf16.mxu0 0
    %185 = vmatpush1.bf16.msra.mxu0 %v152
    %186 = vmatprep.subr.bf16.mxu0 0
    %187 = vmatpush1.bf16.msra.mxu0 %v153
    %188 = vmatprep.subr.bf16.mxu0 0
    %189 = vmatpush1.bf16.msra.mxu0 %v154
    %190 = vmatprep.subr.bf16.mxu0 0
    %191 = vmatpush1.bf16.msra.mxu0 %v155
    %192 = vmatprep.subr.bf16.mxu0 0
    %193 = vmatpush1.bf16.msra.mxu0 %v156
    %194 = vmatprep.subr.bf16.mxu0 0
    %195 = vmatpush1.bf16.msra.mxu0 %v157
    %196 = vmatprep.subr.bf16.mxu0 0
    %197 = vmatpush1.bf16.msra.mxu0 %v158
    %198 = vmatprep.subr.bf16.mxu0 0
    %199 = vmatpush1.bf16.msra.mxu0 %v159
    %200 = vmatprep.subr.bf16.mxu0 0
    %201 = vmatpush1.bf16.msra.mxu0 %v160
    %202 = vmatprep.subr.bf16.mxu0 0
    %203 = vmatpush1.bf16.msra.mxu0 %v161
    %204 = vmatprep.subr.bf16.mxu0 0
    %205 = vmatpush1.bf16.msra.mxu0 %v162
    %206 = vmatprep.subr.bf16.mxu0 0
    %207 = vmatpush1.bf16.msra.mxu0 %v163
    %208 = vmatprep.subr.bf16.mxu0 0
    %209 = vmatpush1.bf16.msra.mxu0 %v164
    %210 = vmatprep.subr.bf16.mxu0 0
    %211 = vmatpush1.bf16.msra.mxu0 %v165
    %212 = vmatprep.subr.bf16.mxu0 0
    %213 = vmatpush1.bf16.msra.mxu0 %v166
    %214 = vmatprep.subr.bf16.mxu0 0
    %215 = vmatpush1.bf16.msra.mxu0 %v167
    %216 = vmatprep.mubr.bf16.mxu0 %v80
    %217 = vmatmul.mubr.bf16.gmra.mrb[0].mxu0 %v79
    %v218 = vpop.f32.mrb[0].mxu0
    %v219 = vadd.f32 %v86, %v218
    %v220 = vpop.f32.mrb[0].mxu0
    %v221 = vpop.f32.mrb[0].mxu0
    %v222 = vpop.f32.mrb[0].mxu0
    %223 = vdwg.mxu0
    %v224 = vmax.f32 %v219, 0.0
    %v225 = vand.u32 2147483647, %v219
    %v226 = vsub.f32 0.0, %v225
    %v227 = vmul.f32 %v226, 1.442695
    %v228 = vpow.pop %v227
    %v229 = vadd.f32 %v228, 1.0
    %v230 = vlog2.pop %v229
    %v231 = vmul.f32 %v230, 0.6931472
    %v232 = vmul.f32 -0.5, %v228
    %v233 = vadd.f32 %v232, 1.0
    %v234 = vmul.f32 %v233, %v228
    %v235 = vand.u32 2147483647, %v228
    %vm236 = vcmp.lt.f32.partialorder %v235, 0.0004427343
    %v237 = vsel %vm236, %v234, %v231
    %v238 = vadd.f32 %v224, %v237
    %vm239 = vcmask 523264
    %240 = vst.msk [vmem:[#allocation7] sm:$0xff] %vm239, %v238
    %242 = vrot.lane.b32.xlu0 %v238, 64
    %v243 = vpop.permute.xlu0 %242
    %245 = vst.msk [vmem:[#allocation8] sm:$0xff] %vm239, %v243
    // Predicated region
    $region22: #{tpu_custom_call.1} parent=1 // pred_check
      _
    $region23: #{tpu_custom_call.1} parent=1 // pred_check_branch
      %247 = sbr.rel (0) target = $region25
    $region24: #{tpu_custom_call.1} parent=1 // pred_region
      %s249 = ssub.s32 128, 128
      %250 = vsyncadd [#allocation4], %s249
      %s252 = sshll.u32 [#allocation7], 4
      %s253 = int_to_ptr.vmem [resolvable:$true] %s252
      %255 = dma.vmem_to_hbm [thread:$0]  %s253, 128, %s3, [#allocation4]
    $region25: #{tpu_custom_call.1} parent=1 // pred_fallthru
      _
    // Predicated region
    $region26: #{tpu_custom_call.1} parent=1 // pred_check
      _
    $region27: #{tpu_custom_call.1} parent=1 // pred_check_branch
      %257 = sbr.rel (0) target = $region29
    $region28: #{tpu_custom_call.1} parent=1 // pred_region
      %s259 = ssub.s32 128, 128
      %260 = vsyncadd [#allocation9], %s259
      %s262 = sshll.u32 [#allocation8], 4
      %s263 = int_to_ptr.vmem [resolvable:$true] %s262
      %265 = dma.vmem_to_hbm [thread:$0]  %s263, 128, %s4, [#allocation9]
    $region29: #{tpu_custom_call.1} parent=1 // pred_fallthru
      _
    // Predicated region
    $region30: #{tpu_custom_call.1} parent=1 // pred_check
      _
    $region31: #{tpu_custom_call.1} parent=1 // pred_check_branch
      %267 = sbr.rel (0) target = $region33
    $region32: #{tpu_custom_call.1} parent=1 // pred_region
      %268 = dma.done [#allocation4], 128
    $region33: #{tpu_custom_call.1} parent=1 // pred_fallthru
      _
    // Predicated region
    $region34: #{tpu_custom_call.1} parent=1 // pred_check
      _
    $region35: #{tpu_custom_call.1} parent=1 // pred_check_branch
      %270 = sbr.rel (0) target = $region37
    $region36: #{tpu_custom_call.1} parent=1 // pred_region
      %271 = dma.done [#allocation9], 128
    $region37: #{tpu_custom_call.1} parent=1 // pred_fallthru
      _
    %272 = vsyncpa [#allocation3], 1
    %273 = vsyncpa [#allocation6], 1
    %274 = vsyncpa [#allocation4], 1
    %275 = vsyncpa [#allocation9], 1

</llo_original>
